<compile_context>
chip_gen: v6e
topology: v6e:2x2x1
jax: 0.10.0
libtpu: 0.0.40
codegen_flags: <defaults>
</compile_context>

<pallas_src>
import jax
import jax.numpy as jnp
from jax.experimental import pallas as pl
from jax.experimental.pallas import tpu as pltpu


_LANE = 128
_BLOCK_BYTES_TARGET = 4 * 1024 * 1024   # ~4 MiB blocks; 2x(in+out) buffers ~16 MiB VMEM
_VMEM_LIMIT_BYTES = 32 * 1024 * 1024    # safe scoped-VMEM budget on v5e / v6e / v7x
_MIN_STRIP_BYTES = 1 * 1024 * 1024      # threshold for the squeezed-batch (pure-DMA) path
_MAX_UNROLL_B = 64                      # cap on per-batch unrolling inside the kernel


def _sublane_multiple(dtype):
    """Minimum sublane tile for the output block's second-to-last dim (dtype aware)."""
    itemsize = jnp.dtype(dtype).itemsize
    if itemsize >= 4:
        return 8
    if itemsize == 2:
        return 16
    return 32


def _largest_divisor_tile(n, sub, cap):
    """Largest multiple of `sub` that divides n and is <= cap (None if none)."""
    t = min(n, max(cap, sub))
    t -= t % sub
    while t >= sub:
        if n % t == 0:
            return t
        t -= sub
    return None


def _copy_kernel(x_ref, o_ref):
    # The BlockSpec index maps already place this (ts, H) strip at its transposed
    # destination; the kernel body is a straight VMEM copy (DMA does the transpose).
    o_ref[...] = x_ref[...]


def _swap_block_kernel(x_ref, o_ref):
    # x_ref: (ts, B, H) -> o_ref: (B, ts, H).
    # Short unrolled per-batch strip copies instead of a full in-VMEM swapaxes
    # (avoids a large cross-sublane relayout for the whole block).
    B = o_ref.shape[0]
    for b in range(B):
        o_ref[b] = x_ref[:, b]


def transpose01_pallas(x, *, block_bytes=_BLOCK_BYTES_TARGET,
                       min_strip_bytes=_MIN_STRIP_BYTES):
    """Swap axes 0 and 1 of a 3-D array: (S, B, H) -> (B, S, H)."""
    S, B, H = x.shape
    itemsize = jnp.dtype(x.dtype).itemsize
    sub = _sublane_multiple(x.dtype)

    # Tiny feature dim (lane-sparse / masked stores), ragged seq length or degenerate
    # sizes: the ~0.35us/step kernel overhead costs more than XLA's own transpose.
    if H < _LANE or S == 0 or B == 0 or S % sub != 0:
        return jnp.swapaxes(x, 0, 1)

    out_shape = jax.ShapeDtypeStruct((B, S, H), x.dtype)
    cost = pl.CostEstimate(flops=0, transcendentals=0,
                           bytes_accessed=2 * x.size * itemsize)

    strip_bytes = H * itemsize           # one (1, H) feature row
    row_bytes = B * H * itemsize         # one (1, B, H) slab

    # Path A: one (seq-tile, batch-element) strip per grid step; the transpose is done
    # entirely by the block index maps (pure DMA), the kernel is a plain copy.
    ts_a = _largest_divisor_tile(S, sub, block_bytes // strip_bytes)
    # Path B: full batch per grid step (typical small RNN batch); unrolled per-batch
    # strip copies keep per-step bytes large even when a single (ts, H) strip is tiny.
    ts_b = _largest_divisor_tile(S, sub, block_bytes // row_bytes)

    use_a = (
        ts_a is not None
        and (ts_a * strip_bytes >= min_strip_bytes
             or B > _MAX_UNROLL_B
             or sub * row_bytes > block_bytes
             or ts_b is None)
    )

    if use_a:
        ts = ts_a
        grid = (S // ts, B)              # plenty of parallel steps for 2-TC chips
        return pl.pallas_call(
            _copy_kernel,
            out_shape=out_shape,
            grid_spec=pltpu.PrefetchScalarGridSpec(
                num_scalar_prefetch=0,
                grid=grid,
                in_specs=[pl.BlockSpec((ts, None, H), lambda i, j: (i, j, 0))],
                out_specs=pl.BlockSpec((None, ts, H), lambda i, j: (j, i, 0)),
            ),
            compiler_params=pltpu.CompilerParams(
                dimension_semantics=("parallel", "parallel"),
                vmem_limit_bytes=_VMEM_LIMIT_BYTES),
            cost_estimate=cost,
        )(x)

    if ts_b is None:   # should not happen (S % sub == 0), kept for safety
        return jnp.swapaxes(x, 0, 1)

    ts = ts_b
    grid = (S // ts,)
    return pl.pallas_call(
        _swap_block_kernel,
        out_shape=out_shape,
        grid_spec=pltpu.PrefetchScalarGridSpec(
            num_scalar_prefetch=0,
            grid=grid,
            in_specs=[pl.BlockSpec((ts, B, H), lambda i: (i, 0, 0))],
            out_specs=pl.BlockSpec((B, ts, H), lambda i: (0, i, 0)),
        ),
        compiler_params=pltpu.CompilerParams(
            dimension_semantics=("parallel",),
            vmem_limit_bytes=_VMEM_LIMIT_BYTES),
        cost_estimate=cost,
    )(x)


class TransposePallas:
    """Mirror of the PyTorch Transpose(dim0, dim1) module."""

    def __init__(self, dim0, dim1):
        self.dim0 = dim0
        self.dim1 = dim1

    def __call__(self, x):
        nd = x.ndim
        d0 = self.dim0 % nd
        d1 = self.dim1 % nd
        if d0 == d1:
            return x
        d0, d1 = min(d0, d1), max(d0, d1)

        # Hot path (sort_gru.py): swap of the two leading axes of a >=3-D tensor.
        # Trailing feature dims stay contiguous, so flattening them into one lane
        # axis is free and the only HBM pass is the Pallas kernel itself.
        if d0 == 0 and d1 == 1 and nd >= 3:
            S, B = x.shape[0], x.shape[1]
            rest_shape = x.shape[2:]
            rest = 1
            for r in rest_shape:
                rest *= r
            if rest == 0 or S == 0 or B == 0:
                return jnp.swapaxes(x, 0, 1)
            x3 = x.reshape(S, B, rest)
            y3 = transpose01_pallas(x3)
            return y3.reshape((B, S) + rest_shape)

        # Other dim pairs: a single XLA transpose is already one full HBM pass;
        # pre-permuting the data for the (0,1) kernel would add a second full pass.
        # TODO(synk): express general dim-pair swaps directly via grid/index maps.
        return jnp.swapaxes(x, d0, d1)


if __name__ == "__main__":
    key = jax.random.PRNGKey(0)
    k1, k2, k3, k4, k5, k6 = jax.random.split(key, 6)

    # 1) RNN-style seq-major input (seq=16, batch=4, hidden=128): Pallas path (full-B blocks).
    x1 = jax.random.normal(k1, (16, 4, 128), dtype=jnp.float32)
    y1 = jax.block_until_ready(TransposePallas(0, 1)(x1))
    ref1 = jnp.swapaxes(x1, 0, 1)
    assert y1.shape == ref1.shape and jnp.array_equal(y1, ref1)

    # 2) bf16 input: dtype-aware sublane tiling (ts multiple of 16), Pallas path.
    x2 = jax.random.normal(k2, (32, 2, 128), dtype=jnp.bfloat16)
    y2 = jax.block_until_ready(TransposePallas(0, 1)(x2))
    ref2 = jnp.swapaxes(x2, 0, 1)
    assert y2.shape == ref2.shape and jnp.array_equal(y2, ref2)

    # 3) 4-D input: trailing feature dims flattened into one lane-dense axis.
    x3 = jax.random.normal(k3, (8, 2, 4, 128), dtype=jnp.float32)
    y3 = jax.block_until_ready(TransposePallas(0, 1)(x3))
    ref3 = jnp.swapaxes(x3, 0, 1)
    assert y3.shape == ref3.shape and jnp.array_equal(y3, ref3)

    # 4) Tiny feature dim: wrapper falls back to XLA (kernel overhead would dominate).
    x4 = jax.random.normal(k4, (16, 2, 32), dtype=jnp.float32)
    y4 = jax.block_until_ready(TransposePallas(0, 1)(x4))
    ref4 = jnp.swapaxes(x4, 0, 1)
    assert y4.shape == ref4.shape and jnp.array_equal(y4, ref4)

    # 5) Exercise the squeezed-batch (pure index-map / DMA-transpose) path too.
    x5 = jax.random.normal(k5, (32, 3, 256), dtype=jnp.float32)
    y5 = jax.block_until_ready(transpose01_pallas(x5, min_strip_bytes=0))
    ref5 = jnp.swapaxes(x5, 0, 1)
    assert y5.shape == ref5.shape and jnp.array_equal(y5, ref5)

    # 6) Non-leading dim pair with negative dims: single XLA transpose path.
    x6 = jax.random.normal(k6, (2, 4, 16, 16), dtype=jnp.float32)
    y6 = jax.block_until_ready(TransposePallas(-2, -1)(x6))
    ref6 = jnp.swapaxes(x6, -2, -1)
    assert y6.shape == ref6.shape and jnp.array_equal(y6, ref6)

    print("KERNEL_OK")
</pallas_src>

<mosaic_0001>
module attributes {stable_mosaic.version = 11 : i64} {
  func.func @_swap_block_kernel(%arg0: i32, %arg1: memref<16x4x128xf32, #tpu.memory_space<vmem>>, %arg2: memref<4x16x128xf32, #tpu.memory_space<vmem>>) attributes {dimension_semantics = [#tpu.dimension_semantics<parallel>], iteration_bounds = array<i64: 1>, scalar_prefetch = 0 : i64, scratch_operands = 0 : i64, tpu.core_type = #tpu.core_type<tc>, window_params = [{transform_indices = @transform_0, window_bounds = array<i64: 16, 4, 128>}, {transform_indices = @transform_1, window_bounds = array<i64: 4, 16, 128>}]} {
    %c0 = arith.constant 0 : index
    %c0_0 = arith.constant 0 : index
    %c0_1 = arith.constant 0 : index
    %0 = vector.load %arg1[%c0, %c0_0, %c0_1] : memref<16x4x128xf32, #tpu.memory_space<vmem>>, vector<16x1x128xf32>
    %1 = vector.shape_cast %0 : vector<16x1x128xf32> to vector<16x128xf32>
    %c0_2 = arith.constant 0 : index
    %c0_3 = arith.constant 0 : index
    %c0_4 = arith.constant 0 : index
    %2 = vector.load %arg2[%c0_2, %c0_3, %c0_4] : memref<4x16x128xf32, #tpu.memory_space<vmem>>, vector<1x16x128xf32>
    %3 = vector.shape_cast %2 : vector<1x16x128xf32> to vector<16x128xf32>
    %4 = vector.shape_cast %1 : vector<16x128xf32> to vector<1x16x128xf32>
    tpu.vector_store %arg2[%c0_2, %c0_3, %c0_4], %4 {strides = array<i32>} : memref<4x16x128xf32, #tpu.memory_space<vmem>>, vector<1x16x128xf32>,
    %c0_5 = arith.constant 0 : index
    %c1 = arith.constant 1 : index
    %c0_6 = arith.constant 0 : index
    %5 = vector.load %arg1[%c0_5, %c1, %c0_6] : memref<16x4x128xf32, #tpu.memory_space<vmem>>, vector<16x1x128xf32>
    %6 = vector.shape_cast %5 : vector<16x1x128xf32> to vector<16x128xf32>
    %c1_7 = arith.constant 1 : index
    %c0_8 = arith.constant 0 : index
    %c0_9 = arith.constant 0 : index
    %7 = vector.load %arg2[%c1_7, %c0_8, %c0_9] : memref<4x16x128xf32, #tpu.memory_space<vmem>>, vector<1x16x128xf32>
    %8 = vector.shape_cast %7 : vector<1x16x128xf32> to vector<16x128xf32>
    %9 = vector.shape_cast %6 : vector<16x128xf32> to vector<1x16x128xf32>
    tpu.vector_store %arg2[%c1_7, %c0_8, %c0_9], %9 {strides = array<i32>} : memref<4x16x128xf32, #tpu.memory_space<vmem>>, vector<1x16x128xf32>,
    %c0_10 = arith.constant 0 : index
    %c2 = arith.constant 2 : index
    %c0_11 = arith.constant 0 : index
    %10 = vector.load %arg1[%c0_10, %c2, %c0_11] : memref<16x4x128xf32, #tpu.memory_space<vmem>>, vector<16x1x128xf32>
    %11 = vector.shape_cast %10 : vector<16x1x128xf32> to vector<16x128xf32>
    %c2_12 = arith.constant 2 : index
    %c0_13 = arith.constant 0 : index
    %c0_14 = arith.constant 0 : index
    %12 = vector.load %arg2[%c2_12, %c0_13, %c0_14] : memref<4x16x128xf32, #tpu.memory_space<vmem>>, vector<1x16x128xf32>
    %13 = vector.shape_cast %12 : vector<1x16x128xf32> to vector<16x128xf32>
    %14 = vector.shape_cast %11 : vector<16x128xf32> to vector<1x16x128xf32>
    tpu.vector_store %arg2[%c2_12, %c0_13, %c0_14], %14 {strides = array<i32>} : memref<4x16x128xf32, #tpu.memory_space<vmem>>, vector<1x16x128xf32>,
    %c0_15 = arith.constant 0 : index
    %c3 = arith.constant 3 : index
    %c0_16 = arith.constant 0 : index
    %15 = vector.load %arg1[%c0_15, %c3, %c0_16] : memref<16x4x128xf32, #tpu.memory_space<vmem>>, vector<16x1x128xf32>
    %16 = vector.shape_cast %15 : vector<16x1x128xf32> to vector<16x128xf32>
    %c3_17 = arith.constant 3 : index
    %c0_18 = arith.constant 0 : index
    %c0_19 = arith.constant 0 : index
    %17 = vector.load %arg2[%c3_17, %c0_18, %c0_19] : memref<4x16x128xf32, #tpu.memory_space<vmem>>, vector<1x16x128xf32>
    %18 = vector.shape_cast %17 : vector<1x16x128xf32> to vector<16x128xf32>
    %19 = vector.shape_cast %16 : vector<16x128xf32> to vector<1x16x128xf32>
    tpu.vector_store %arg2[%c3_17, %c0_18, %c0_19], %19 {strides = array<i32>} : memref<4x16x128xf32, #tpu.memory_space<vmem>>, vector<1x16x128xf32>,
    return
  }
  func.func @transform_0(%arg0: i32) -> (i32, i32, i32) {
    %c0_i32 = arith.constant 0 : i32
    %c0_i32_0 = arith.constant 0 : i32
    %c0_i32_1 = arith.constant 0 : i32
    return %arg0, %c0_i32, %c0_i32_0 : i32, i32, i32
  }
  func.func @transform_1(%arg0: i32) -> (i32, i32, i32) {
    %c0_i32 = arith.constant 0 : i32
    %c0_i32_0 = arith.constant 0 : i32
    %c0_i32_1 = arith.constant 0 : i32
    return %c0_i32, %arg0, %c0_i32_0 : i32, i32, i32
  }
}

</mosaic_0001>

<llo_original>
// kernel: tpu_custom_call.1
$region0: #{tpu_custom_call.1}
  #allocation0 [shape = 'u32[]', space=smem, size = 0x4, offset = 0x4, fixed_abs, tag = 'smem constant byte address 0x4 - core index']
  #allocation1 [shape = 'u32[144,128]{1,0:T(1,128)}', space=vmem, size = 0x12000, scoped, tag = 'internal scratch']
  %s0 = inlined_call_operand.hbm [shape: f32[16,4,128], index: 0, kind: input, shape index: {}]
  %s1 = inlined_call_operand.hbm [shape: f32[4,16,128], index: 1, kind: output, shape index: {}]
  %s2 = sld [smem:[#allocation0]]
  $region18: #{tpu_custom_call.1} parent=0
    _
  %s4 = ssub.s32 1, %s2
  %s5 = scalar_select 0, %s4, %s2
  $region1: #{tpu_custom_call.1} parent=0
    #allocation2 [shape = 'u8[32768]{0}', space=vmem, size = 0x8000, scoped, tag = 'input window, operand 0, single buffered']
    #allocation3 [shape = 's32[1]{0}', space=sflag, size = 0x4, scoped, tag = 'scoped memory for tpu_custom_call.1']
    #allocation4 [shape = 's32[1]{0}', space=sflag, size = 0x4, scoped, tag = 'scoped memory for tpu_custom_call.1']
    #allocation5 [shape = 'u8[32768]{0}', space=vmem, size = 0x8000, scoped, tag = 'output window, operand 0, single buffered']
    %6 = vsyncpa [#allocation3], 0
    %7 = vsyncpa [#allocation4], 0
    // Predicated region
    $region2: #{tpu_custom_call.1} parent=1 // pred_check
      _
    $region3: #{tpu_custom_call.1} parent=1 // pred_check_branch
      %9 = sbr.rel (0) target = $region5
    $region4: #{tpu_custom_call.1} parent=1 // pred_region
      %s11 = ssub.s32 1024, 1024
      %12 = vsyncadd [#allocation3], %s11
      %s13 = sshll.u32 [#allocation2], 4
      %s14 = int_to_ptr.vmem [resolvable:$true] %s13
      %19 = dma.hbm_to_vmem [thread:$0]  %s0, 1024, %s14, [#allocation3], 64, 64, 4
    $region5: #{tpu_custom_call.1} parent=1 // pred_fallthru
      _
    // Predicated region
    $region6: #{tpu_custom_call.1} parent=1 // pred_check
      _
    $region7: #{tpu_custom_call.1} parent=1 // pred_check_branch
      %21 = sbr.rel (0) target = $region9
    $region8: #{tpu_custom_call.1} parent=1 // pred_region
      %22 = dma.done [#allocation3], 1024
    $region9: #{tpu_custom_call.1} parent=1 // pred_fallthru
      _
    %v23 = vld [vmem:[#allocation2] sm:$0x1]
    %v24 = vld [vmem:[#allocation2 + $0x4] sm:$0x1]
    %v25 = vld [vmem:[#allocation2 + $0x8] sm:$0x1]
    %v26 = vld [vmem:[#allocation2 + $0xc] sm:$0x1]
    %v27 = vld [vmem:[#allocation2 + $0x10] sm:$0x1]
    %v28 = vld [vmem:[#allocation2 + $0x14] sm:$0x1]
    %v29 = vld [vmem:[#allocation2 + $0x18] sm:$0x1]
    %v30 = vld [vmem:[#allocation2 + $0x1c] sm:$0x1]
    %v31 = vld [vmem:[#allocation2 + $0x20] sm:$0x1]
    %v32 = vld [vmem:[#allocation2 + $0x24] sm:$0x1]
    %v33 = vld [vmem:[#allocation2 + $0x28] sm:$0x1]
    %v34 = vld [vmem:[#allocation2 + $0x2c] sm:$0x1]
    %v35 = vld [vmem:[#allocation2 + $0x30] sm:$0x1]
    %v36 = vld [vmem:[#allocation2 + $0x34] sm:$0x1]
    %v37 = vld [vmem:[#allocation2 + $0x38] sm:$0x1]
    %v38 = vld [vmem:[#allocation2 + $0x3c] sm:$0x1]
    %v55 = vrot.slane %v24, 7
    %vm56 = vcmask 1041409
    %v57 = vsel %vm56, %v55, %v23
    %v58 = vrot.slane %v25, 6
    %vm59 = vcmask 1042434
    %v60 = vsel %vm59, %v58, %v57
    %v61 = vrot.slane %v26, 5
    %vm62 = vcmask 1043459
    %v63 = vsel %vm62, %v61, %v60
    %v64 = vrot.slane %v27, 4
    %vm65 = vcmask 1044484
    %v66 = vsel %vm65, %v64, %v63
    %v67 = vrot.slane %v28, 3
    %vm68 = vcmask 1045509
    %v69 = vsel %vm68, %v67, %v66
    %v70 = vrot.slane %v29, 2
    %vm71 = vcmask 1046534
    %v72 = vsel %vm71, %v70, %v69
    %v73 = vrot.slane %v30, 1
    %vm74 = vcmask 1047559
    %v75 = vsel %vm74, %v73, %v72
    %v76 = vrot.slane %v32, 7
    %v77 = vsel %vm56, %v76, %v31
    %v78 = vrot.slane %v33, 6
    %v79 = vsel %vm59, %v78, %v77
    %v80 = vrot.slane %v34, 5
    %v81 = vsel %vm62, %v80, %v79
    %v82 = vrot.slane %v35, 4
    %v83 = vsel %vm65, %v82, %v81
    %v84 = vrot.slane %v36, 3
    %v85 = vsel %vm68, %v84, %v83
    %v86 = vrot.slane %v37, 2
    %v87 = vsel %vm71, %v86, %v85
    %v88 = vrot.slane %v38, 1
    %v89 = vsel %vm74, %v88, %v87
    %92 = vst [vmem:[#allocation5] sm:$0xff] %v75
    %93 = vst [vmem:[#allocation5 + $0x8] sm:$0xff] %v89
    %v94 = vld [vmem:[#allocation2 + $0x1] sm:$0x1]
    %v95 = vld [vmem:[#allocation2 + $0x5] sm:$0x1]
    %v96 = vld [vmem:[#allocation2 + $0x9] sm:$0x1]
    %v97 = vld [vmem:[#allocation2 + $0xd] sm:$0x1]
    %v98 = vld [vmem:[#allocation2 + $0x11] sm:$0x1]
    %v99 = vld [vmem:[#allocation2 + $0x15] sm:$0x1]
    %v100 = vld [vmem:[#allocation2 + $0x19] sm:$0x1]
    %v101 = vld [vmem:[#allocation2 + $0x1d] sm:$0x1]
    %v102 = vld [vmem:[#allocation2 + $0x21] sm:$0x1]
    %v103 = vld [vmem:[#allocation2 + $0x25] sm:$0x1]
    %v104 = vld [vmem:[#allocation2 + $0x29] sm:$0x1]
    %v105 = vld [vmem:[#allocation2 + $0x2d] sm:$0x1]
    %v106 = vld [vmem:[#allocation2 + $0x31] sm:$0x1]
    %v107 = vld [vmem:[#allocation2 + $0x35] sm:$0x1]
    %v108 = vld [vmem:[#allocation2 + $0x39] sm:$0x1]
    %v109 = vld [vmem:[#allocation2 + $0x3d] sm:$0x1]
    %v126 = vrot.slane %v95, 7
    %v127 = vsel %vm56, %v126, %v94
    %v128 = vrot.slane %v96, 6
    %v129 = vsel %vm59, %v128, %v127
    %v130 = vrot.slane %v97, 5
    %v131 = vsel %vm62, %v130, %v129
    %v132 = vrot.slane %v98, 4
    %v133 = vsel %vm65, %v132, %v131
    %v134 = vrot.slane %v99, 3
    %v135 = vsel %vm68, %v134, %v133
    %v136 = vrot.slane %v100, 2
    %v137 = vsel %vm71, %v136, %v135
    %v138 = vrot.slane %v101, 1
    %v139 = vsel %vm74, %v138, %v137
    %v140 = vrot.slane %v103, 7
    %v141 = vsel %vm56, %v140, %v102
    %v142 = vrot.slane %v104, 6
    %v143 = vsel %vm59, %v142, %v141
    %v144 = vrot.slane %v105, 5
    %v145 = vsel %vm62, %v144, %v143
    %v146 = vrot.slane %v106, 4
    %v147 = vsel %vm65, %v146, %v145
    %v148 = vrot.slane %v107, 3
    %v149 = vsel %vm68, %v148, %v147
    %v150 = vrot.slane %v108, 2
    %v151 = vsel %vm71, %v150, %v149
    %v152 = vrot.slane %v109, 1
    %v153 = vsel %vm74, %v152, %v151
    %s156 = scalar_lea.vmem [#allocation5], 16
    %157 = vst [vmem:[%s156] sm:$0xff] %v139
    %158 = vst [vmem:[%s156 + $0x8] sm:$0xff] %v153
    %v159 = vld [vmem:[#allocation2 + $0x2] sm:$0x1]
    %v160 = vld [vmem:[#allocation2 + $0x6] sm:$0x1]
    %v161 = vld [vmem:[#allocation2 + $0xa] sm:$0x1]
    %v162 = vld [vmem:[#allocation2 + $0xe] sm:$0x1]
    %v163 = vld [vmem:[#allocation2 + $0x12] sm:$0x1]
    %v164 = vld [vmem:[#allocation2 + $0x16] sm:$0x1]
    %v165 = vld [vmem:[#allocation2 + $0x1a] sm:$0x1]
    %v166 = vld [vmem:[#allocation2 + $0x1e] sm:$0x1]
    %v167 = vld [vmem:[#allocation2 + $0x22] sm:$0x1]
    %v168 = vld [vmem:[#allocation2 + $0x26] sm:$0x1]
    %v169 = vld [vmem:[#allocation2 + $0x2a] sm:$0x1]
    %v170 = vld [vmem:[#allocation2 + $0x2e] sm:$0x1]
    %v171 = vld [vmem:[#allocation2 + $0x32] sm:$0x1]
    %v172 = vld [vmem:[#allocation2 + $0x36] sm:$0x1]
    %v173 = vld [vmem:[#allocation2 + $0x3a] sm:$0x1]
    %v174 = vld [vmem:[#allocation2 + $0x3e] sm:$0x1]
    %v191 = vrot.slane %v160, 7
    %v192 = vsel %vm56, %v191, %v159
    %v193 = vrot.slane %v161, 6
    %v194 = vsel %vm59, %v193, %v192
    %v195 = vrot.slane %v162, 5
    %v196 = vsel %vm62, %v195, %v194
    %v197 = vrot.slane %v163, 4
    %v198 = vsel %vm65, %v197, %v196
    %v199 = vrot.slane %v164, 3
    %v200 = vsel %vm68, %v199, %v198
    %v201 = vrot.slane %v165, 2
    %v202 = vsel %vm71, %v201, %v200
    %v203 = vrot.slane %v166, 1
    %v204 = vsel %vm74, %v203, %v202
    %v205 = vrot.slane %v168, 7
    %v206 = vsel %vm56, %v205, %v167
    %v207 = vrot.slane %v169, 6
    %v208 = vsel %vm59, %v207, %v206
    %v209 = vrot.slane %v170, 5
    %v210 = vsel %vm62, %v209, %v208
    %v211 = vrot.slane %v171, 4
    %v212 = vsel %vm65, %v211, %v210
    %v213 = vrot.slane %v172, 3
    %v214 = vsel %vm68, %v213, %v212
    %v215 = vrot.slane %v173, 2
    %v216 = vsel %vm71, %v215, %v214
    %v217 = vrot.slane %v174, 1
    %v218 = vsel %vm74, %v217, %v216
    %s221 = scalar_lea.vmem [#allocation5], 32
    %222 = vst [vmem:[%s221] sm:$0xff] %v204
    %223 = vst [vmem:[%s221 + $0x8] sm:$0xff] %v218
    %v224 = vld [vmem:[#allocation2 + $0x3] sm:$0x1]
    %v225 = vld [vmem:[#allocation2 + $0x7] sm:$0x1]
    %v226 = vld [vmem:[#allocation2 + $0xb] sm:$0x1]
    %v227 = vld [vmem:[#allocation2 + $0xf] sm:$0x1]
    %v228 = vld [vmem:[#allocation2 + $0x13] sm:$0x1]
    %v229 = vld [vmem:[#allocation2 + $0x17] sm:$0x1]
    %v230 = vld [vmem:[#allocation2 + $0x1b] sm:$0x1]
    %v231 = vld [vmem:[#allocation2 + $0x1f] sm:$0x1]
    %v232 = vld [vmem:[#allocation2 + $0x23] sm:$0x1]
    %v233 = vld [vmem:[#allocation2 + $0x27] sm:$0x1]
    %v234 = vld [vmem:[#allocation2 + $0x2b] sm:$0x1]
    %v235 = vld [vmem:[#allocation2 + $0x2f] sm:$0x1]
    %v236 = vld [vmem:[#allocation2 + $0x33] sm:$0x1]
    %v237 = vld [vmem:[#allocation2 + $0x37] sm:$0x1]
    %v238 = vld [vmem:[#allocation2 + $0x3b] sm:$0x1]
    %v239 = vld [vmem:[#allocation2 + $0x3f] sm:$0x1]
    %v256 = vrot.slane %v225, 7
    %v257 = vsel %vm56, %v256, %v224
    %v258 = vrot.slane %v226, 6
    %v259 = vsel %vm59, %v258, %v257
    %v260 = vrot.slane %v227, 5
    %v261 = vsel %vm62, %v260, %v259
    %v262 = vrot.slane %v228, 4
    %v263 = vsel %vm65, %v262, %v261
    %v264 = vrot.slane %v229, 3
    %v265 = vsel %vm68, %v264, %v263
    %v266 = vrot.slane %v230, 2
    %v267 = vsel %vm71, %v266, %v265
    %v268 = vrot.slane %v231, 1
    %v269 = vsel %vm74, %v268, %v267
    %v270 = vrot.slane %v233, 7
    %v271 = vsel %vm56, %v270, %v232
    %v272 = vrot.slane %v234, 6
    %v273 = vsel %vm59, %v272, %v271
    %v274 = vrot.slane %v235, 5
    %v275 = vsel %vm62, %v274, %v273
    %v276 = vrot.slane %v236, 4
    %v277 = vsel %vm65, %v276, %v275
    %v278 = vrot.slane %v237, 3
    %v279 = vsel %vm68, %v278, %v277
    %v280 = vrot.slane %v238, 2
    %v281 = vsel %vm71, %v280, %v279
    %v282 = vrot.slane %v239, 1
    %v283 = vsel %vm74, %v282, %v281
    %s286 = scalar_lea.vmem [#allocation5], 48
    %287 = vst [vmem:[%s286] sm:$0xff] %v269
    %288 = vst [vmem:[%s286 + $0x8] sm:$0xff] %v283
    // Predicated region
    $region10: #{tpu_custom_call.1} parent=1 // pred_check
      _
    $region11: #{tpu_custom_call.1} parent=1 // pred_check_branch
      %290 = sbr.rel (0) target = $region13
    $region12: #{tpu_custom_call.1} parent=1 // pred_region
      %s292 = ssub.s32 1024, 1024
      %293 = vsyncadd [#allocation4], %s292
      %s294 = sshll.u32 [#allocation5], 4
      %s295 = int_to_ptr.vmem [resolvable:$true] %s294
      %300 = dma.vmem_to_hbm [thread:$0]  %s295, 1024, %s1, [#allocation4], 128, 128, 8
    $region13: #{tpu_custom_call.1} parent=1 // pred_fallthru
      _
    // Predicated region
    $region14: #{tpu_custom_call.1} parent=1 // pred_check
      _
    $region15: #{tpu_custom_call.1} parent=1 // pred_check_branch
      %302 = sbr.rel (0) target = $region17
    $region16: #{tpu_custom_call.1} parent=1 // pred_region
      %303 = dma.done [#allocation4], 1024
    $region17: #{tpu_custom_call.1} parent=1 // pred_fallthru
      _
    %304 = vsyncpa [#allocation3], 1
    %305 = vsyncpa [#allocation4], 1

</llo_original>
